<compile_context>
chip_gen: v5e
topology: v5e:2x2
jax: 0.10.0
libtpu: 0.0.40
codegen_flags: <defaults>
</compile_context>

<pallas_src>
import functools

import jax
import jax.numpy as jnp
from jax.experimental import pallas as pl
from jax.experimental.pallas import tpu as pltpu


# -----------------------------------------------------------------------------
# Fused kernel: one-hot embedding -> LSTM (last hidden) -> fc_cnn -> MLP head
# -----------------------------------------------------------------------------
def fused_hybrid_kernel(ids_ref, table_ref, wih_ref, whh_ref, bl_ref,
                        cnn_ref, wc_ref, bc_ref,
                        w1o_ref, w1c_ref, b1_ref, w2_ref, b2_ref,
                        out_ref, gx_scr,
                        *, batch_pad, seq_len, hidden_dim):
    Bp, T, H = batch_pad, seq_len, hidden_dim
    V, E = table_ref.shape
    BT = T * Bp

    # 1) Embedding gather as a one-hot MXU matmul (no scalar-indexed copies).
    #    ids are t-major (row = t*Bp + b).  Invalid ids (>= V) yield zero rows.
    ids = ids_ref[...]                                            # (BT, 1) i32
    vocab_iota = jax.lax.broadcasted_iota(jnp.int32, (BT, V), 1)  # (BT, V)
    one_hot = (vocab_iota == ids).astype(jnp.float32)             # (BT, V)
    emb = jnp.dot(one_hot, table_ref[...],
                  preferred_element_type=jnp.float32)             # (BT, E)

    # 2) Hoisted input projection: one well-filled MXU matmul for all
    #    timesteps, staged into a sublane-aligned (T, Bp, 4H) scratch so the
    #    recurrence reads a clean aligned tile per step.
    gates_x = (jnp.dot(emb, wih_ref[...],
                       preferred_element_type=jnp.float32)
               + bl_ref[...])                                     # (BT, 4H)
    gx_scr[...] = gates_x.reshape(T, Bp, 4 * H)

    # Lane mask for the g-gate lanes (2H..3H): tanh there, sigmoid elsewhere.
    lane = jax.lax.broadcasted_iota(jnp.int32, (Bp, 4 * H), 1)
    g_mask = (lane >= 2 * H) & (lane < 3 * H)

    whh = whh_ref[...]
    # TODO(synk): hold W_hh resident in MXU staging regs across the loop via
    # pltpu.matmul_push_rhs / matmul_acc_lhs / matmul_pop to drop T-1 weight
    # pushes; kept as jnp.dot for lowering robustness at these shapes.

    # 3) Recurrence.  Only h @ W_hh sits on the serial path.  A single tanh
    #    EUP pass per step covers all 4 gates via sigmoid(x)=0.5*tanh(0.5x)+0.5.
    def step(t, carry):
        h, c = carry
        gates = gx_scr[t] + jnp.dot(h, whh,
                                    preferred_element_type=jnp.float32)
        y = jnp.where(g_mask, gates, 0.5 * gates)
        tv = jnp.tanh(y)
        act = jnp.where(g_mask, tv, 0.5 * tv + 0.5)
        i_g = act[:, 0 * H:1 * H]
        f_g = act[:, 1 * H:2 * H]
        g_g = act[:, 2 * H:3 * H]
        o_g = act[:, 3 * H:4 * H]
        c = f_g * c + i_g * g_g
        h = o_g * jnp.tanh(c)
        return h, c

    h0 = jnp.zeros((Bp, H), jnp.float32)
    c0 = jnp.zeros((Bp, H), jnp.float32)
    h, _ = jax.lax.fori_loop(0, T, step, (h0, c0), unroll=True)
    # h now holds ocr_out[:, -1, :] (padded rows are discarded by the wrapper)

    # 4) Head: fc_cnn + (implicit concat via split W1) + Linear/ReLU/Linear.
    cnn_out = (jnp.dot(cnn_ref[...], wc_ref[...],
                       preferred_element_type=jnp.float32) + bc_ref[...])
    pre = (jnp.dot(h, w1o_ref[...], preferred_element_type=jnp.float32)
           + jnp.dot(cnn_out, w1c_ref[...], preferred_element_type=jnp.float32)
           + b1_ref[...])
    hid = jnp.maximum(pre, 0.0)
    out_ref[...] = (jnp.dot(hid, w2_ref[...],
                            preferred_element_type=jnp.float32)
                    + b2_ref[...]).astype(out_ref.dtype)


# -----------------------------------------------------------------------------
# Parameter init (PyTorch layouts, pre-transposed to (in, out) for the kernel)
# -----------------------------------------------------------------------------
def init_params(key, vocab_size, embedding_dim, hidden_dim, cnn_feature_dim,
                num_classes):
    ks = jax.random.split(key, 10)
    E, H, F, C = embedding_dim, hidden_dim, cnn_feature_dim, num_classes
    s = 0.1
    emb_table = jax.random.normal(ks[0], (vocab_size, E), jnp.float32) * s
    w_ih = jax.random.normal(ks[1], (4 * H, E), jnp.float32) * s     # torch layout
    w_hh = jax.random.normal(ks[2], (4 * H, H), jnp.float32) * s
    b_ih = jax.random.normal(ks[3], (4 * H,), jnp.float32) * s
    b_hh = jax.random.normal(ks[4], (4 * H,), jnp.float32) * s
    w_cnn = jax.random.normal(ks[5], (H, F), jnp.float32) * s        # fc_cnn
    b_cnn = jax.random.normal(ks[6], (H,), jnp.float32) * s
    w1 = jax.random.normal(ks[7], (H, 2 * H), jnp.float32) * s       # fc_combined[0]
    b1 = jax.random.normal(ks[8], (H,), jnp.float32) * s
    w2 = jax.random.normal(ks[9], (C, H), jnp.float32) * s           # fc_combined[2]
    b2 = jnp.zeros((C,), jnp.float32)

    return {
        "emb_table": emb_table,                      # (V, E)
        "w_ih_t": jnp.transpose(w_ih),               # (E, 4H)
        "w_hh_t": jnp.transpose(w_hh),               # (H, 4H)
        "b_lstm": (b_ih + b_hh).reshape(1, 4 * H),   # (1, 4H)
        "wc_t": jnp.transpose(w_cnn),                # (F, H)
        "bc": b_cnn.reshape(1, H),
        "w1o_t": jnp.transpose(w1[:, :H]),           # (H, H) ocr half
        "w1c_t": jnp.transpose(w1[:, H:]),           # (H, H) cnn half
        "b1": b1.reshape(1, H),
        "w2_t": jnp.transpose(w2),                   # (H, C)
        "b2": b2.reshape(1, C),
    }


# -----------------------------------------------------------------------------
# Full forward: one fused pallas_call; batch padded to a full sublane tile
# -----------------------------------------------------------------------------
@jax.jit
def hybrid_forward(params, ocr, cnn):
    B, T = ocr.shape
    H = params["w_hh_t"].shape[0]
    C = params["b2"].shape[1]

    # Pad batch to a multiple of 8 sublanes (free compute at tiny B, removes
    # masked sublane stores / alignment fixups everywhere in the kernel).
    Bp = max(8, ((B + 7) // 8) * 8)
    pad = Bp - B
    ocr_p = jnp.pad(ocr.astype(jnp.int32), ((0, pad), (0, 0)))   # (Bp, T)
    cnn_p = jnp.pad(cnn, ((0, pad), (0, 0)))                     # (Bp, F)
    # Flat t-major ids column for the in-kernel one-hot gather.
    ids = jnp.transpose(ocr_p).reshape(T * Bp, 1)                # (T*Bp, 1)

    vmem = pl.BlockSpec(memory_space=pltpu.MemorySpace.VMEM)

    out_p = pl.pallas_call(
        functools.partial(fused_hybrid_kernel,
                          batch_pad=Bp, seq_len=T, hidden_dim=H),
        out_shape=jax.ShapeDtypeStruct((Bp, C), jnp.float32),
        in_specs=[vmem] * 13,
        out_specs=vmem,
        scratch_shapes=[pltpu.VMEM((T, Bp, 4 * H), jnp.float32)],
    )(ids, params["emb_table"], params["w_ih_t"], params["w_hh_t"],
      params["b_lstm"], cnn_p, params["wc_t"], params["bc"],
      params["w1o_t"], params["w1c_t"], params["b1"],
      params["w2_t"], params["b2"])
    return out_p[:B]


if __name__ == "__main__":
    vocab_size = 100
    embedding_dim = 32
    hidden_dim = 32
    cnn_feature_dim = 16
    num_classes = 8
    batch = 2
    seq_len = 8

    key = jax.random.PRNGKey(0)
    k_param, k_ocr, k_cnn = jax.random.split(key, 3)

    params = init_params(k_param, vocab_size, embedding_dim, hidden_dim,
                         cnn_feature_dim, num_classes)
    ocr = jax.random.randint(k_ocr, (batch, seq_len), 0, vocab_size,
                             dtype=jnp.int32)
    cnn = jax.random.normal(k_cnn, (batch, cnn_feature_dim), jnp.float32)

    out = hybrid_forward(params, ocr, cnn)
    out = jax.block_until_ready(out)
    assert out.shape == (batch, num_classes)
    print("KERNEL_OK")
</pallas_src>

<mosaic_0001>
module attributes {stable_mosaic.version = 11 : i64} {
  func.func @fused_hybrid_kernel(%arg0: memref<64x1xi32, #tpu.memory_space<vmem>>, %arg1: memref<100x32xf32, #tpu.memory_space<vmem>>, %arg2: memref<32x128xf32, #tpu.memory_space<vmem>>, %arg3: memref<32x128xf32, #tpu.memory_space<vmem>>, %arg4: memref<1x128xf32, #tpu.memory_space<vmem>>, %arg5: memref<8x16xf32, #tpu.memory_space<vmem>>, %arg6: memref<16x32xf32, #tpu.memory_space<vmem>>, %arg7: memref<1x32xf32, #tpu.memory_space<vmem>>, %arg8: memref<32x32xf32, #tpu.memory_space<vmem>>, %arg9: memref<32x32xf32, #tpu.memory_space<vmem>>, %arg10: memref<1x32xf32, #tpu.memory_space<vmem>>, %arg11: memref<32x8xf32, #tpu.memory_space<vmem>>, %arg12: memref<1x8xf32, #tpu.memory_space<vmem>>, %arg13: memref<8x8xf32, #tpu.memory_space<vmem>>, %arg14: memref<8x8x128xf32, #tpu.memory_space<vmem>>) attributes {dimension_semantics = [], scalar_prefetch = 0 : i64, scratch_operands = 1 : i64, tpu.core_type = #tpu.core_type<tc>} {
    %c0 = arith.constant 0 : index
    %c0_0 = arith.constant 0 : index
    %0 = vector.load %arg0[%c0, %c0_0] : memref<64x1xi32, #tpu.memory_space<vmem>>, vector<64x1xi32>
    %1 = tpu.iota {dimensions = array<i32: 1>} : vector<64x100xi32>
    %2 = vector.broadcast %0 : vector<64x1xi32> to vector<64x100xi32>
    %3 = arith.cmpi eq, %1, %2 : vector<64x100xi32>
    %4 = arith.extui %3 : vector<64x100xi1> to vector<64x100xi32>
    %5 = arith.sitofp %4 : vector<64x100xi32> to vector<64x100xf32>
    %c0_1 = arith.constant 0 : index
    %c0_2 = arith.constant 0 : index
    %6 = vector.load %arg1[%c0_1, %c0_2] : memref<100x32xf32, #tpu.memory_space<vmem>>, vector<100x32xf32>
    %cst = arith.constant dense<0.000000e+00> : vector<64x32xf32>
    %7 = tpu.matmul %5, %6, %cst {dimension_numbers = #tpu.dot_dimension_numbers<[1], [0], [0], [1], [0, 0, 1, 1], [], []>} : vector<64x100xf32>, vector<100x32xf32>, vector<64x32xf32> -> vector<64x32xf32>
    %c0_3 = arith.constant 0 : index
    %c0_4 = arith.constant 0 : index
    %8 = vector.load %arg2[%c0_3, %c0_4] : memref<32x128xf32, #tpu.memory_space<vmem>>, vector<32x128xf32>
    %cst_5 = arith.constant dense<0.000000e+00> : vector<64x128xf32>
    %9 = tpu.matmul %7, %8, %cst_5 {dimension_numbers = #tpu.dot_dimension_numbers<[1], [0], [0], [1], [0, 0, 1, 1], [], []>} : vector<64x32xf32>, vector<32x128xf32>, vector<64x128xf32> -> vector<64x128xf32>
    %c0_6 = arith.constant 0 : index
    %c0_7 = arith.constant 0 : index
    %10 = vector.load %arg4[%c0_6, %c0_7] : memref<1x128xf32, #tpu.memory_space<vmem>>, vector<1x128xf32>
    %11 = vector.broadcast %10 : vector<1x128xf32> to vector<64x128xf32>
    %12 = arith.addf %9, %11 : vector<64x128xf32>
    %13 = vector.shape_cast %12 : vector<64x128xf32> to vector<8x8x128xf32>
    %c0_8 = arith.constant 0 : index
    %c0_9 = arith.constant 0 : index
    %c0_10 = arith.constant 0 : index
    %14 = vector.load %arg14[%c0_8, %c0_9, %c0_10] : memref<8x8x128xf32, #tpu.memory_space<vmem>>, vector<8x8x128xf32>
    tpu.vector_store %arg14[%c0_8, %c0_9, %c0_10], %13 {strides = array<i32>} : memref<8x8x128xf32, #tpu.memory_space<vmem>>, vector<8x8x128xf32>,
    %15 = tpu.iota {dimensions = array<i32: 1>} : vector<8x128xi32>
    %c64_i32 = arith.constant 64 : i32
    %16 = vector.broadcast %c64_i32 : i32 to vector<8x128xi32>
    %17 = arith.cmpi sge, %15, %16 : vector<8x128xi32>
    %c96_i32 = arith.constant 96 : i32
    %18 = vector.broadcast %c96_i32 : i32 to vector<8x128xi32>
    %19 = arith.cmpi slt, %15, %18 : vector<8x128xi32>
    %20 = arith.andi %17, %19 : vector<8x128xi1>
    %c0_11 = arith.constant 0 : index
    %c0_12 = arith.constant 0 : index
    %21 = vector.load %arg3[%c0_11, %c0_12] : memref<32x128xf32, #tpu.memory_space<vmem>>, vector<32x128xf32>
    %cst_13 = arith.constant 0.000000e+00 : f32
    %22 = vector.broadcast %cst_13 : f32 to vector<8x32xf32>
    %cst_14 = arith.constant 0.000000e+00 : f32
    %23 = vector.broadcast %cst_14 : f32 to vector<8x32xf32>
    %c0_i32 = arith.constant 0 : i32
    %24 = arith.index_cast %c0_i32 : i32 to index
    %c0_15 = arith.constant 0 : index
    %c0_16 = arith.constant 0 : index
    %25 = vector.load %arg14[%24, %c0_15, %c0_16] : memref<8x8x128xf32, #tpu.memory_space<vmem>>, vector<1x8x128xf32>
    %26 = vector.shape_cast %25 : vector<1x8x128xf32> to vector<8x128xf32>
    %cst_17 = arith.constant dense<0.000000e+00> : vector<8x128xf32>
    %27 = tpu.matmul %22, %21, %cst_17 {dimension_numbers = #tpu.dot_dimension_numbers<[1], [0], [0], [1], [0, 0, 1, 1], [], []>} : vector<8x32xf32>, vector<32x128xf32>, vector<8x128xf32> -> vector<8x128xf32>
    %28 = arith.addf %26, %27 : vector<8x128xf32>
    %cst_18 = arith.constant 5.000000e-01 : f32
    %29 = vector.broadcast %cst_18 : f32 to vector<8x128xf32>
    %30 = arith.mulf %29, %28 : vector<8x128xf32>
    %31 = arith.select %20, %28, %30 : vector<8x128xi1>, vector<8x128xf32>
    %32 = math.tanh %31 : vector<8x128xf32>
    %cst_19 = arith.constant 5.000000e-01 : f32
    %33 = vector.broadcast %cst_19 : f32 to vector<8x128xf32>
    %34 = arith.mulf %33, %32 : vector<8x128xf32>
    %cst_20 = arith.constant 5.000000e-01 : f32
    %35 = vector.broadcast %cst_20 : f32 to vector<8x128xf32>
    %36 = arith.addf %34, %35 : vector<8x128xf32>
    %37 = arith.select %20, %32, %36 : vector<8x128xi1>, vector<8x128xf32>
    %38 = vector.extract_strided_slice %37 {offsets = [0, 0], sizes = [8, 32], strides = [1, 1]} : vector<8x128xf32> to vector<8x32xf32>
    %39 = vector.extract_strided_slice %37 {offsets = [0, 32], sizes = [8, 32], strides = [1, 1]} : vector<8x128xf32> to vector<8x32xf32>
    %40 = vector.extract_strided_slice %37 {offsets = [0, 64], sizes = [8, 32], strides = [1, 1]} : vector<8x128xf32> to vector<8x32xf32>
    %41 = vector.extract_strided_slice %37 {offsets = [0, 96], sizes = [8, 32], strides = [1, 1]} : vector<8x128xf32> to vector<8x32xf32>
    %42 = arith.mulf %39, %23 : vector<8x32xf32>
    %43 = arith.mulf %38, %40 : vector<8x32xf32>
    %44 = arith.addf %42, %43 : vector<8x32xf32>
    %45 = math.tanh %44 : vector<8x32xf32>
    %46 = arith.mulf %41, %45 : vector<8x32xf32>
    %c1_i32 = arith.constant 1 : i32
    %47 = arith.index_cast %c1_i32 : i32 to index
    %c0_21 = arith.constant 0 : index
    %c0_22 = arith.constant 0 : index
    %48 = vector.load %arg14[%47, %c0_21, %c0_22] : memref<8x8x128xf32, #tpu.memory_space<vmem>>, vector<1x8x128xf32>
    %49 = vector.shape_cast %48 : vector<1x8x128xf32> to vector<8x128xf32>
    %cst_23 = arith.constant dense<0.000000e+00> : vector<8x128xf32>
    %50 = tpu.matmul %46, %21, %cst_23 {dimension_numbers = #tpu.dot_dimension_numbers<[1], [0], [0], [1], [0, 0, 1, 1], [], []>} : vector<8x32xf32>, vector<32x128xf32>, vector<8x128xf32> -> vector<8x128xf32>
    %51 = arith.addf %49, %50 : vector<8x128xf32>
    %cst_24 = arith.constant 5.000000e-01 : f32
    %52 = vector.broadcast %cst_24 : f32 to vector<8x128xf32>
    %53 = arith.mulf %52, %51 : vector<8x128xf32>
    %54 = arith.select %20, %51, %53 : vector<8x128xi1>, vector<8x128xf32>
    %55 = math.tanh %54 : vector<8x128xf32>
    %cst_25 = arith.constant 5.000000e-01 : f32
    %56 = vector.broadcast %cst_25 : f32 to vector<8x128xf32>
    %57 = arith.mulf %56, %55 : vector<8x128xf32>
    %cst_26 = arith.constant 5.000000e-01 : f32
    %58 = vector.broadcast %cst_26 : f32 to vector<8x128xf32>
    %59 = arith.addf %57, %58 : vector<8x128xf32>
    %60 = arith.select %20, %55, %59 : vector<8x128xi1>, vector<8x128xf32>
    %61 = vector.extract_strided_slice %60 {offsets = [0, 0], sizes = [8, 32], strides = [1, 1]} : vector<8x128xf32> to vector<8x32xf32>
    %62 = vector.extract_strided_slice %60 {offsets = [0, 32], sizes = [8, 32], strides = [1, 1]} : vector<8x128xf32> to vector<8x32xf32>
    %63 = vector.extract_strided_slice %60 {offsets = [0, 64], sizes = [8, 32], strides = [1, 1]} : vector<8x128xf32> to vector<8x32xf32>
    %64 = vector.extract_strided_slice %60 {offsets = [0, 96], sizes = [8, 32], strides = [1, 1]} : vector<8x128xf32> to vector<8x32xf32>
    %65 = arith.mulf %62, %44 : vector<8x32xf32>
    %66 = arith.mulf %61, %63 : vector<8x32xf32>
    %67 = arith.addf %65, %66 : vector<8x32xf32>
    %68 = math.tanh %67 : vector<8x32xf32>
    %69 = arith.mulf %64, %68 : vector<8x32xf32>
    %c2_i32 = arith.constant 2 : i32
    %70 = arith.index_cast %c2_i32 : i32 to index
    %c0_27 = arith.constant 0 : index
    %c0_28 = arith.constant 0 : index
    %71 = vector.load %arg14[%70, %c0_27, %c0_28] : memref<8x8x128xf32, #tpu.memory_space<vmem>>, vector<1x8x128xf32>
    %72 = vector.shape_cast %71 : vector<1x8x128xf32> to vector<8x128xf32>
    %cst_29 = arith.constant dense<0.000000e+00> : vector<8x128xf32>
    %73 = tpu.matmul %69, %21, %cst_29 {dimension_numbers = #tpu.dot_dimension_numbers<[1], [0], [0], [1], [0, 0, 1, 1], [], []>} : vector<8x32xf32>, vector<32x128xf32>, vector<8x128xf32> -> vector<8x128xf32>
    %74 = arith.addf %72, %73 : vector<8x128xf32>
    %cst_30 = arith.constant 5.000000e-01 : f32
    %75 = vector.broadcast %cst_30 : f32 to vector<8x128xf32>
    %76 = arith.mulf %75, %74 : vector<8x128xf32>
    %77 = arith.select %20, %74, %76 : vector<8x128xi1>, vector<8x128xf32>
    %78 = math.tanh %77 : vector<8x128xf32>
    %cst_31 = arith.constant 5.000000e-01 : f32
    %79 = vector.broadcast %cst_31 : f32 to vector<8x128xf32>
    %80 = arith.mulf %79, %78 : vector<8x128xf32>
    %cst_32 = arith.constant 5.000000e-01 : f32
    %81 = vector.broadcast %cst_32 : f32 to vector<8x128xf32>
    %82 = arith.addf %80, %81 : vector<8x128xf32>
    %83 = arith.select %20, %78, %82 : vector<8x128xi1>, vector<8x128xf32>
    %84 = vector.extract_strided_slice %83 {offsets = [0, 0], sizes = [8, 32], strides = [1, 1]} : vector<8x128xf32> to vector<8x32xf32>
    %85 = vector.extract_strided_slice %83 {offsets = [0, 32], sizes = [8, 32], strides = [1, 1]} : vector<8x128xf32> to vector<8x32xf32>
    %86 = vector.extract_strided_slice %83 {offsets = [0, 64], sizes = [8, 32], strides = [1, 1]} : vector<8x128xf32> to vector<8x32xf32>
    %87 = vector.extract_strided_slice %83 {offsets = [0, 96], sizes = [8, 32], strides = [1, 1]} : vector<8x128xf32> to vector<8x32xf32>
    %88 = arith.mulf %85, %67 : vector<8x32xf32>
    %89 = arith.mulf %84, %86 : vector<8x32xf32>
    %90 = arith.addf %88, %89 : vector<8x32xf32>
    %91 = math.tanh %90 : vector<8x32xf32>
    %92 = arith.mulf %87, %91 : vector<8x32xf32>
    %c3_i32 = arith.constant 3 : i32
    %93 = arith.index_cast %c3_i32 : i32 to index
    %c0_33 = arith.constant 0 : index
    %c0_34 = arith.constant 0 : index
    %94 = vector.load %arg14[%93, %c0_33, %c0_34] : memref<8x8x128xf32, #tpu.memory_space<vmem>>, vector<1x8x128xf32>
    %95 = vector.shape_cast %94 : vector<1x8x128xf32> to vector<8x128xf32>
    %cst_35 = arith.constant dense<0.000000e+00> : vector<8x128xf32>
    %96 = tpu.matmul %92, %21, %cst_35 {dimension_numbers = #tpu.dot_dimension_numbers<[1], [0], [0], [1], [0, 0, 1, 1], [], []>} : vector<8x32xf32>, vector<32x128xf32>, vector<8x128xf32> -> vector<8x128xf32>
    %97 = arith.addf %95, %96 : vector<8x128xf32>
    %cst_36 = arith.constant 5.000000e-01 : f32
    %98 = vector.broadcast %cst_36 : f32 to vector<8x128xf32>
    %99 = arith.mulf %98, %97 : vector<8x128xf32>
    %100 = arith.select %20, %97, %99 : vector<8x128xi1>, vector<8x128xf32>
    %101 = math.tanh %100 : vector<8x128xf32>
    %cst_37 = arith.constant 5.000000e-01 : f32
    %102 = vector.broadcast %cst_37 : f32 to vector<8x128xf32>
    %103 = arith.mulf %102, %101 : vector<8x128xf32>
    %cst_38 = arith.constant 5.000000e-01 : f32
    %104 = vector.broadcast %cst_38 : f32 to vector<8x128xf32>
    %105 = arith.addf %103, %104 : vector<8x128xf32>
    %106 = arith.select %20, %101, %105 : vector<8x128xi1>, vector<8x128xf32>
    %107 = vector.extract_strided_slice %106 {offsets = [0, 0], sizes = [8, 32], strides = [1, 1]} : vector<8x128xf32> to vector<8x32xf32>
    %108 = vector.extract_strided_slice %106 {offsets = [0, 32], sizes = [8, 32], strides = [1, 1]} : vector<8x128xf32> to vector<8x32xf32>
    %109 = vector.extract_strided_slice %106 {offsets = [0, 64], sizes = [8, 32], strides = [1, 1]} : vector<8x128xf32> to vector<8x32xf32>
    %110 = vector.extract_strided_slice %106 {offsets = [0, 96], sizes = [8, 32], strides = [1, 1]} : vector<8x128xf32> to vector<8x32xf32>
    %111 = arith.mulf %108, %90 : vector<8x32xf32>
    %112 = arith.mulf %107, %109 : vector<8x32xf32>
    %113 = arith.addf %111, %112 : vector<8x32xf32>
    %114 = math.tanh %113 : vector<8x32xf32>
    %115 = arith.mulf %110, %114 : vector<8x32xf32>
    %c4_i32 = arith.constant 4 : i32
    %116 = arith.index_cast %c4_i32 : i32 to index
    %c0_39 = arith.constant 0 : index
    %c0_40 = arith.constant 0 : index
    %117 = vector.load %arg14[%116, %c0_39, %c0_40] : memref<8x8x128xf32, #tpu.memory_space<vmem>>, vector<1x8x128xf32>
    %118 = vector.shape_cast %117 : vector<1x8x128xf32> to vector<8x128xf32>
    %cst_41 = arith.constant dense<0.000000e+00> : vector<8x128xf32>
    %119 = tpu.matmul %115, %21, %cst_41 {dimension_numbers = #tpu.dot_dimension_numbers<[1], [0], [0], [1], [0, 0, 1, 1], [], []>} : vector<8x32xf32>, vector<32x128xf32>, vector<8x128xf32> -> vector<8x128xf32>
    %120 = arith.addf %118, %119 : vector<8x128xf32>
    %cst_42 = arith.constant 5.000000e-01 : f32
    %121 = vector.broadcast %cst_42 : f32 to vector<8x128xf32>
    %122 = arith.mulf %121, %120 : vector<8x128xf32>
    %123 = arith.select %20, %120, %122 : vector<8x128xi1>, vector<8x128xf32>
    %124 = math.tanh %123 : vector<8x128xf32>
    %cst_43 = arith.constant 5.000000e-01 : f32
    %125 = vector.broadcast %cst_43 : f32 to vector<8x128xf32>
    %126 = arith.mulf %125, %124 : vector<8x128xf32>
    %cst_44 = arith.constant 5.000000e-01 : f32
    %127 = vector.broadcast %cst_44 : f32 to vector<8x128xf32>
    %128 = arith.addf %126, %127 : vector<8x128xf32>
    %129 = arith.select %20, %124, %128 : vector<8x128xi1>, vector<8x128xf32>
    %130 = vector.extract_strided_slice %129 {offsets = [0, 0], sizes = [8, 32], strides = [1, 1]} : vector<8x128xf32> to vector<8x32xf32>
    %131 = vector.extract_strided_slice %129 {offsets = [0, 32], sizes = [8, 32], strides = [1, 1]} : vector<8x128xf32> to vector<8x32xf32>
    %132 = vector.extract_strided_slice %129 {offsets = [0, 64], sizes = [8, 32], strides = [1, 1]} : vector<8x128xf32> to vector<8x32xf32>
    %133 = vector.extract_strided_slice %129 {offsets = [0, 96], sizes = [8, 32], strides = [1, 1]} : vector<8x128xf32> to vector<8x32xf32>
    %134 = arith.mulf %131, %113 : vector<8x32xf32>
    %135 = arith.mulf %130, %132 : vector<8x32xf32>
    %136 = arith.addf %134, %135 : vector<8x32xf32>
    %137 = math.tanh %136 : vector<8x32xf32>
    %138 = arith.mulf %133, %137 : vector<8x32xf32>
    %c5_i32 = arith.constant 5 : i32
    %139 = arith.index_cast %c5_i32 : i32 to index
    %c0_45 = arith.constant 0 : index
    %c0_46 = arith.constant 0 : index
    %140 = vector.load %arg14[%139, %c0_45, %c0_46] : memref<8x8x128xf32, #tpu.memory_space<vmem>>, vector<1x8x128xf32>
    %141 = vector.shape_cast %140 : vector<1x8x128xf32> to vector<8x128xf32>
    %cst_47 = arith.constant dense<0.000000e+00> : vector<8x128xf32>
    %142 = tpu.matmul %138, %21, %cst_47 {dimension_numbers = #tpu.dot_dimension_numbers<[1], [0], [0], [1], [0, 0, 1, 1], [], []>} : vector<8x32xf32>, vector<32x128xf32>, vector<8x128xf32> -> vector<8x128xf32>
    %143 = arith.addf %141, %142 : vector<8x128xf32>
    %cst_48 = arith.constant 5.000000e-01 : f32
    %144 = vector.broadcast %cst_48 : f32 to vector<8x128xf32>
    %145 = arith.mulf %144, %143 : vector<8x128xf32>
    %146 = arith.select %20, %143, %145 : vector<8x128xi1>, vector<8x128xf32>
    %147 = math.tanh %146 : vector<8x128xf32>
    %cst_49 = arith.constant 5.000000e-01 : f32
    %148 = vector.broadcast %cst_49 : f32 to vector<8x128xf32>
    %149 = arith.mulf %148, %147 : vector<8x128xf32>
    %cst_50 = arith.constant 5.000000e-01 : f32
    %150 = vector.broadcast %cst_50 : f32 to vector<8x128xf32>
    %151 = arith.addf %149, %150 : vector<8x128xf32>
    %152 = arith.select %20, %147, %151 : vector<8x128xi1>, vector<8x128xf32>
    %153 = vector.extract_strided_slice %152 {offsets = [0, 0], sizes = [8, 32], strides = [1, 1]} : vector<8x128xf32> to vector<8x32xf32>
    %154 = vector.extract_strided_slice %152 {offsets = [0, 32], sizes = [8, 32], strides = [1, 1]} : vector<8x128xf32> to vector<8x32xf32>
    %155 = vector.extract_strided_slice %152 {offsets = [0, 64], sizes = [8, 32], strides = [1, 1]} : vector<8x128xf32> to vector<8x32xf32>
    %156 = vector.extract_strided_slice %152 {offsets = [0, 96], sizes = [8, 32], strides = [1, 1]} : vector<8x128xf32> to vector<8x32xf32>
    %157 = arith.mulf %154, %136 : vector<8x32xf32>
    %158 = arith.mulf %153, %155 : vector<8x32xf32>
    %159 = arith.addf %157, %158 : vector<8x32xf32>
    %160 = math.tanh %159 : vector<8x32xf32>
    %161 = arith.mulf %156, %160 : vector<8x32xf32>
    %c6_i32 = arith.constant 6 : i32
    %162 = arith.index_cast %c6_i32 : i32 to index
    %c0_51 = arith.constant 0 : index
    %c0_52 = arith.constant 0 : index
    %163 = vector.load %arg14[%162, %c0_51, %c0_52] : memref<8x8x128xf32, #tpu.memory_space<vmem>>, vector<1x8x128xf32>
    %164 = vector.shape_cast %163 : vector<1x8x128xf32> to vector<8x128xf32>
    %cst_53 = arith.constant dense<0.000000e+00> : vector<8x128xf32>
    %165 = tpu.matmul %161, %21, %cst_53 {dimension_numbers = #tpu.dot_dimension_numbers<[1], [0], [0], [1], [0, 0, 1, 1], [], []>} : vector<8x32xf32>, vector<32x128xf32>, vector<8x128xf32> -> vector<8x128xf32>
    %166 = arith.addf %164, %165 : vector<8x128xf32>
    %cst_54 = arith.constant 5.000000e-01 : f32
    %167 = vector.broadcast %cst_54 : f32 to vector<8x128xf32>
    %168 = arith.mulf %167, %166 : vector<8x128xf32>
    %169 = arith.select %20, %166, %168 : vector<8x128xi1>, vector<8x128xf32>
    %170 = math.tanh %169 : vector<8x128xf32>
    %cst_55 = arith.constant 5.000000e-01 : f32
    %171 = vector.broadcast %cst_55 : f32 to vector<8x128xf32>
    %172 = arith.mulf %171, %170 : vector<8x128xf32>
    %cst_56 = arith.constant 5.000000e-01 : f32
    %173 = vector.broadcast %cst_56 : f32 to vector<8x128xf32>
    %174 = arith.addf %172, %173 : vector<8x128xf32>
    %175 = arith.select %20, %170, %174 : vector<8x128xi1>, vector<8x128xf32>
    %176 = vector.extract_strided_slice %175 {offsets = [0, 0], sizes = [8, 32], strides = [1, 1]} : vector<8x128xf32> to vector<8x32xf32>
    %177 = vector.extract_strided_slice %175 {offsets = [0, 32], sizes = [8, 32], strides = [1, 1]} : vector<8x128xf32> to vector<8x32xf32>
    %178 = vector.extract_strided_slice %175 {offsets = [0, 64], sizes = [8, 32], strides = [1, 1]} : vector<8x128xf32> to vector<8x32xf32>
    %179 = vector.extract_strided_slice %175 {offsets = [0, 96], sizes = [8, 32], strides = [1, 1]} : vector<8x128xf32> to vector<8x32xf32>
    %180 = arith.mulf %177, %159 : vector<8x32xf32>
    %181 = arith.mulf %176, %178 : vector<8x32xf32>
    %182 = arith.addf %180, %181 : vector<8x32xf32>
    %183 = math.tanh %182 : vector<8x32xf32>
    %184 = arith.mulf %179, %183 : vector<8x32xf32>
    %c7_i32 = arith.constant 7 : i32
    %185 = arith.index_cast %c7_i32 : i32 to index
    %c0_57 = arith.constant 0 : index
    %c0_58 = arith.constant 0 : index
    %186 = vector.load %arg14[%185, %c0_57, %c0_58] : memref<8x8x128xf32, #tpu.memory_space<vmem>>, vector<1x8x128xf32>
    %187 = vector.shape_cast %186 : vector<1x8x128xf32> to vector<8x128xf32>
    %cst_59 = arith.constant dense<0.000000e+00> : vector<8x128xf32>
    %188 = tpu.matmul %184, %21, %cst_59 {dimension_numbers = #tpu.dot_dimension_numbers<[1], [0], [0], [1], [0, 0, 1, 1], [], []>} : vector<8x32xf32>, vector<32x128xf32>, vector<8x128xf32> -> vector<8x128xf32>
    %189 = arith.addf %187, %188 : vector<8x128xf32>
    %cst_60 = arith.constant 5.000000e-01 : f32
    %190 = vector.broadcast %cst_60 : f32 to vector<8x128xf32>
    %191 = arith.mulf %190, %189 : vector<8x128xf32>
    %192 = arith.select %20, %189, %191 : vector<8x128xi1>, vector<8x128xf32>
    %193 = math.tanh %192 : vector<8x128xf32>
    %cst_61 = arith.constant 5.000000e-01 : f32
    %194 = vector.broadcast %cst_61 : f32 to vector<8x128xf32>
    %195 = arith.mulf %194, %193 : vector<8x128xf32>
    %cst_62 = arith.constant 5.000000e-01 : f32
    %196 = vector.broadcast %cst_62 : f32 to vector<8x128xf32>
    %197 = arith.addf %195, %196 : vector<8x128xf32>
    %198 = arith.select %20, %193, %197 : vector<8x128xi1>, vector<8x128xf32>
    %199 = vector.extract_strided_slice %198 {offsets = [0, 0], sizes = [8, 32], strides = [1, 1]} : vector<8x128xf32> to vector<8x32xf32>
    %200 = vector.extract_strided_slice %198 {offsets = [0, 32], sizes = [8, 32], strides = [1, 1]} : vector<8x128xf32> to vector<8x32xf32>
    %201 = vector.extract_strided_slice %198 {offsets = [0, 64], sizes = [8, 32], strides = [1, 1]} : vector<8x128xf32> to vector<8x32xf32>
    %202 = vector.extract_strided_slice %198 {offsets = [0, 96], sizes = [8, 32], strides = [1, 1]} : vector<8x128xf32> to vector<8x32xf32>
    %203 = arith.mulf %200, %182 : vector<8x32xf32>
    %204 = arith.mulf %199, %201 : vector<8x32xf32>
    %205 = arith.addf %203, %204 : vector<8x32xf32>
    %206 = math.tanh %205 : vector<8x32xf32>
    %207 = arith.mulf %202, %206 : vector<8x32xf32>
    %c8_i32 = arith.constant 8 : i32
    %c0_63 = arith.constant 0 : index
    %c0_64 = arith.constant 0 : index
    %208 = vector.load %arg5[%c0_63, %c0_64] : memref<8x16xf32, #tpu.memory_space<vmem>>, vector<8x16xf32>
    %c0_65 = arith.constant 0 : index
    %c0_66 = arith.constant 0 : index
    %209 = vector.load %arg6[%c0_65, %c0_66] : memref<16x32xf32, #tpu.memory_space<vmem>>, vector<16x32xf32>
    %cst_67 = arith.constant dense<0.000000e+00> : vector<8x32xf32>
    %210 = tpu.matmul %208, %209, %cst_67 {dimension_numbers = #tpu.dot_dimension_numbers<[1], [0], [0], [1], [0, 0, 1, 1], [], []>} : vector<8x16xf32>, vector<16x32xf32>, vector<8x32xf32> -> vector<8x32xf32>
    %c0_68 = arith.constant 0 : index
    %c0_69 = arith.constant 0 : index
    %211 = vector.load %arg7[%c0_68, %c0_69] : memref<1x32xf32, #tpu.memory_space<vmem>>, vector<1x32xf32>
    %212 = vector.broadcast %211 : vector<1x32xf32> to vector<8x32xf32>
    %213 = arith.addf %210, %212 : vector<8x32xf32>
    %c0_70 = arith.constant 0 : index
    %c0_71 = arith.constant 0 : index
    %214 = vector.load %arg8[%c0_70, %c0_71] : memref<32x32xf32, #tpu.memory_space<vmem>>, vector<32x32xf32>
    %cst_72 = arith.constant dense<0.000000e+00> : vector<8x32xf32>
    %215 = tpu.matmul %207, %214, %cst_72 {dimension_numbers = #tpu.dot_dimension_numbers<[1], [0], [0], [1], [0, 0, 1, 1], [], []>} : vector<8x32xf32>, vector<32x32xf32>, vector<8x32xf32> -> vector<8x32xf32>
    %c0_73 = arith.constant 0 : index
    %c0_74 = arith.constant 0 : index
    %216 = vector.load %arg9[%c0_73, %c0_74] : memref<32x32xf32, #tpu.memory_space<vmem>>, vector<32x32xf32>
    %cst_75 = arith.constant dense<0.000000e+00> : vector<8x32xf32>
    %217 = tpu.matmul %213, %216, %cst_75 {dimension_numbers = #tpu.dot_dimension_numbers<[1], [0], [0], [1], [0, 0, 1, 1], [], []>} : vector<8x32xf32>, vector<32x32xf32>, vector<8x32xf32> -> vector<8x32xf32>
    %218 = arith.addf %215, %217 : vector<8x32xf32>
    %c0_76 = arith.constant 0 : index
    %c0_77 = arith.constant 0 : index
    %219 = vector.load %arg10[%c0_76, %c0_77] : memref<1x32xf32, #tpu.memory_space<vmem>>, vector<1x32xf32>
    %220 = vector.broadcast %219 : vector<1x32xf32> to vector<8x32xf32>
    %221 = arith.addf %218, %220 : vector<8x32xf32>
    %cst_78 = arith.constant 0.000000e+00 : f32
    %222 = vector.broadcast %cst_78 : f32 to vector<8x32xf32>
    %223 = arith.maximumf %221, %222 : vector<8x32xf32>
    %c0_79 = arith.constant 0 : index
    %c0_80 = arith.constant 0 : index
    %224 = vector.load %arg11[%c0_79, %c0_80] : memref<32x8xf32, #tpu.memory_space<vmem>>, vector<32x8xf32>
    %cst_81 = arith.constant dense<0.000000e+00> : vector<8x8xf32>
    %225 = tpu.matmul %223, %224, %cst_81 {dimension_numbers = #tpu.dot_dimension_numbers<[1], [0], [0], [1], [0, 0, 1, 1], [], []>} : vector<8x32xf32>, vector<32x8xf32>, vector<8x8xf32> -> vector<8x8xf32>
    %c0_82 = arith.constant 0 : index
    %c0_83 = arith.constant 0 : index
    %226 = vector.load %arg12[%c0_82, %c0_83] : memref<1x8xf32, #tpu.memory_space<vmem>>, vector<1x8xf32>
    %227 = vector.broadcast %226 : vector<1x8xf32> to vector<8x8xf32>
    %228 = arith.addf %225, %227 : vector<8x8xf32>
    %c0_84 = arith.constant 0 : index
    %c0_85 = arith.constant 0 : index
    %229 = vector.load %arg13[%c0_84, %c0_85] : memref<8x8xf32, #tpu.memory_space<vmem>>, vector<8x8xf32>
    tpu.vector_store %arg13[%c0_84, %c0_85], %228 {strides = array<i32>} : memref<8x8xf32, #tpu.memory_space<vmem>>, vector<8x8xf32>,
    return
  }
}

</mosaic_0001>

<llo_original>
// kernel: hybrid_forward.1
$region0: #{hybrid_forward.1}
  #allocation0 [shape = 'u32[]', space=smem, size = 0x4, offset = 0x4, fixed_abs, tag = 'smem constant byte address 0x4 - core index']
  #allocation1 [shape = 'u32[72,128]{1,0:T(1,128)}', space=vmem, size = 0x9000, scoped, tag = 'internal scratch']
  #allocation2 [shape = 'f32[8,8,128]{2,1,0:T(8,128)}', space=vmem, size = 0x8000, scoped, tag = 'scratch operand']
  %s0 = inlined_call_operand.vmem [shape: s32[64,1], index: 0, kind: input, shape index: {}]
  %s1 = inlined_call_operand.vmem [shape: f32[100,32], index: 1, kind: input, shape index: {}]
  %s2 = inlined_call_operand.vmem [shape: f32[32,128], index: 2, kind: input, shape index: {}]
  %s3 = inlined_call_operand.vmem [shape: f32[32,128], index: 3, kind: input, shape index: {}]
  %s4 = inlined_call_operand.vmem [shape: f32[1,128], index: 4, kind: input, shape index: {}]
  %s5 = inlined_call_operand.vmem [shape: f32[8,16], index: 5, kind: input, shape index: {}]
  %s6 = inlined_call_operand.vmem [shape: f32[16,32], index: 6, kind: input, shape index: {}]
  %s7 = inlined_call_operand.vmem [shape: f32[1,32], index: 7, kind: input, shape index: {}]
  %s8 = inlined_call_operand.vmem [shape: f32[32,32], index: 8, kind: input, shape index: {}]
  %s9 = inlined_call_operand.vmem [shape: f32[32,32], index: 9, kind: input, shape index: {}]
  %s10 = inlined_call_operand.vmem [shape: f32[1,32], index: 10, kind: input, shape index: {}]
  %s11 = inlined_call_operand.vmem [shape: f32[32,8], index: 11, kind: input, shape index: {}]
  %s12 = inlined_call_operand.vmem [shape: f32[1,8], index: 12, kind: input, shape index: {}]
  %s13 = inlined_call_operand.vmem [shape: f32[8,8], index: 13, kind: output, shape index: {}]
  %s14 = sld [smem:[#allocation0]]
  $region62: #{hybrid_forward.1} parent=0
    _
  %s16 = ssub.s32 1, %s14
  %s17 = scalar_select 0, %s16, %s14
  // Predicated region
  $region2: #{hybrid_forward.1} parent=0 // pred_check
    _
  $region3: #{hybrid_forward.1} parent=0 // pred_check_branch
    %19 = sbr.rel (0) target = $region5
  $region4: #{hybrid_forward.1} parent=0 // pred_region
    _
  $region5: #{hybrid_forward.1} parent=0 // pred_fallthru
    _
  // Predicated region
  $region6: #{hybrid_forward.1} parent=0 // pred_check
    _
  $region7: #{hybrid_forward.1} parent=0 // pred_check_branch
    %21 = sbr.rel (0) target = $region9
  $region8: #{hybrid_forward.1} parent=0 // pred_region
    _
  $region9: #{hybrid_forward.1} parent=0 // pred_fallthru
    _
  // Predicated region
  $region10: #{hybrid_forward.1} parent=0 // pred_check
    _
  $region11: #{hybrid_forward.1} parent=0 // pred_check_branch
    %23 = sbr.rel (0) target = $region13
  $region12: #{hybrid_forward.1} parent=0 // pred_region
    _
  $region13: #{hybrid_forward.1} parent=0 // pred_fallthru
    _
  // Predicated region
  $region14: #{hybrid_forward.1} parent=0 // pred_check
    _
  $region15: #{hybrid_forward.1} parent=0 // pred_check_branch
    %25 = sbr.rel (0) target = $region17
  $region16: #{hybrid_forward.1} parent=0 // pred_region
    _
  $region17: #{hybrid_forward.1} parent=0 // pred_fallthru
    _
  // Predicated region
  $region18: #{hybrid_forward.1} parent=0 // pred_check
    _
  $region19: #{hybrid_forward.1} parent=0 // pred_check_branch
    %27 = sbr.rel (0) target = $region21
  $region20: #{hybrid_forward.1} parent=0 // pred_region
    _
  $region21: #{hybrid_forward.1} parent=0 // pred_fallthru
    _
  // Predicated region
  $region22: #{hybrid_forward.1} parent=0 // pred_check
    _
  $region23: #{hybrid_forward.1} parent=0 // pred_check_branch
    %29 = sbr.rel (0) target = $region25
  $region24: #{hybrid_forward.1} parent=0 // pred_region
    _
  $region25: #{hybrid_forward.1} parent=0 // pred_fallthru
    _
  // Predicated region
  $region26: #{hybrid_forward.1} parent=0 // pred_check
    _
  $region27: #{hybrid_forward.1} parent=0 // pred_check_branch
    %31 = sbr.rel (0) target = $region29
  $region28: #{hybrid_forward.1} parent=0 // pred_region
    _
  $region29: #{hybrid_forward.1} parent=0 // pred_fallthru
    _
  // Predicated region
  $region30: #{hybrid_forward.1} parent=0 // pred_check
    _
  $region31: #{hybrid_forward.1} parent=0 // pred_check_branch
    %33 = sbr.rel (0) target = $region33
  $region32: #{hybrid_forward.1} parent=0 // pred_region
    _
  $region33: #{hybrid_forward.1} parent=0 // pred_fallthru
    _
  // Predicated region
  $region34: #{hybrid_forward.1} parent=0 // pred_check
    _
  $region35: #{hybrid_forward.1} parent=0 // pred_check_branch
    %35 = sbr.rel (0) target = $region37
  $region36: #{hybrid_forward.1} parent=0 // pred_region
    _
  $region37: #{hybrid_forward.1} parent=0 // pred_fallthru
    _
  // Predicated region
  $region38: #{hybrid_forward.1} parent=0 // pred_check
    _
  $region39: #{hybrid_forward.1} parent=0 // pred_check_branch
    %37 = sbr.rel (0) target = $region41
  $region40: #{hybrid_forward.1} parent=0 // pred_region
    _
  $region41: #{hybrid_forward.1} parent=0 // pred_fallthru
    _
  // Predicated region
  $region42: #{hybrid_forward.1} parent=0 // pred_check
    _
  $region43: #{hybrid_forward.1} parent=0 // pred_check_branch
    %39 = sbr.rel (0) target = $region45
  $region44: #{hybrid_forward.1} parent=0 // pred_region
    _
  $region45: #{hybrid_forward.1} parent=0 // pred_fallthru
    _
  // Predicated region
  $region46: #{hybrid_forward.1} parent=0 // pred_check
    _
  $region47: #{hybrid_forward.1} parent=0 // pred_check_branch
    %41 = sbr.rel (0) target = $region49
  $region48: #{hybrid_forward.1} parent=0 // pred_region
    _
  $region49: #{hybrid_forward.1} parent=0 // pred_fallthru
    _
  // Predicated region
  $region50: #{hybrid_forward.1} parent=0 // pred_check
    _
  $region51: #{hybrid_forward.1} parent=0 // pred_check_branch
    %43 = sbr.rel (0) target = $region53
  $region52: #{hybrid_forward.1} parent=0 // pred_region
    _
  $region53: #{hybrid_forward.1} parent=0 // pred_fallthru
    _
  %v44 = vld [vmem:[%s0] sm:$0xff]
  %v45 = vld [vmem:[%s0 + $0x8] sm:$0xff]
  %v46 = vld [vmem:[%s0 + $0x10] sm:$0xff]
  %v47 = vld [vmem:[%s0 + $0x18] sm:$0xff]
  %v48 = vld [vmem:[%s0 + $0x20] sm:$0xff]
  %v49 = vld [vmem:[%s0 + $0x28] sm:$0xff]
  %v50 = vld [vmem:[%s0 + $0x30] sm:$0xff]
  %v51 = vld [vmem:[%s0 + $0x38] sm:$0xff]
  %v52 = vlaneseq
  %v53 = vand.u32 %v52, 127
  %54 = vset.pattern.permute.xlu0 0
  %55 = vperm.xlu0 %54, %v44
  %v56 = vpop.permute.xlu0 %55
  %57 = vset.pattern.permute.xlu0 0
  %58 = vperm.xlu0 %57, %v45
  %v59 = vpop.permute.xlu0 %58
  %60 = vset.pattern.permute.xlu0 0
  %61 = vperm.xlu0 %60, %v46
  %v62 = vpop.permute.xlu0 %61
  %63 = vset.pattern.permute.xlu0 0
  %64 = vperm.xlu0 %63, %v47
  %v65 = vpop.permute.xlu0 %64
  %66 = vset.pattern.permute.xlu0 0
  %67 = vperm.xlu0 %66, %v48
  %v68 = vpop.permute.xlu0 %67
  %69 = vset.pattern.permute.xlu0 0
  %70 = vperm.xlu0 %69, %v49
  %v71 = vpop.permute.xlu0 %70
  %72 = vset.pattern.permute.xlu0 0
  %73 = vperm.xlu0 %72, %v50
  %v74 = vpop.permute.xlu0 %73
  %75 = vset.pattern.permute.xlu0 0
  %76 = vperm.xlu0 %75, %v51
  %v77 = vpop.permute.xlu0 %76
  %vm78 = vcmp.eq.s32.totalorder %v53, %v56
  %vm79 = vcmp.eq.s32.totalorder %v53, %v59
  %vm80 = vcmp.eq.s32.totalorder %v53, %v62
  %vm81 = vcmp.eq.s32.totalorder %v53, %v65
  %vm82 = vcmp.eq.s32.totalorder %v53, %v68
  %vm83 = vcmp.eq.s32.totalorder %v53, %v71
  %vm84 = vcmp.eq.s32.totalorder %v53, %v74
  %vm85 = vcmp.eq.s32.totalorder %v53, %v77
  %v86 = vsel %vm78, 1, 0
  %v87 = vsel %vm79, 1, 0
  %v88 = vsel %vm80, 1, 0
  %v89 = vsel %vm81, 1, 0
  %v90 = vsel %vm82, 1, 0
  %v91 = vsel %vm83, 1, 0
  %v92 = vsel %vm84, 1, 0
  %v93 = vsel %vm85, 1, 0
  %v94 = vcvt.s32.f32 %v86
  %v95 = vcvt.s32.f32 %v87
  %v96 = vcvt.s32.f32 %v88
  %v97 = vcvt.s32.f32 %v89
  %v98 = vcvt.s32.f32 %v90
  %v99 = vcvt.s32.f32 %v91
  %v100 = vcvt.s32.f32 %v92
  %v101 = vcvt.s32.f32 %v93
  %v102 = vld [vmem:[%s1] sm:$0xff]
  %v103 = vld [vmem:[%s1 + $0x8] sm:$0xff]
  %v104 = vld [vmem:[%s1 + $0x10] sm:$0xff]
  %v105 = vld [vmem:[%s1 + $0x18] sm:$0xff]
  %v106 = vld [vmem:[%s1 + $0x20] sm:$0xff]
  %v107 = vld [vmem:[%s1 + $0x28] sm:$0xff]
  %v108 = vld [vmem:[%s1 + $0x30] sm:$0xff]
  %v109 = vld [vmem:[%s1 + $0x38] sm:$0xff]
  %v110 = vld [vmem:[%s1 + $0x40] sm:$0xff]
  %v111 = vld [vmem:[%s1 + $0x48] sm:$0xff]
  %v112 = vld [vmem:[%s1 + $0x50] sm:$0xff]
  %v113 = vld [vmem:[%s1 + $0x58] sm:$0xff]
  %v114 = vld [vmem:[%s1 + $0x60] sm:$0xf]
  %vm115 = vcmask 818176
  %v117 = vsel %vm115, %v94, 0
  %v120 = vsel %vm115, %v95, 0
  %v123 = vsel %vm115, %v96, 0
  %v126 = vsel %vm115, %v97, 0
  %v129 = vsel %vm115, %v98, 0
  %v132 = vsel %vm115, %v99, 0
  %v135 = vsel %vm115, %v100, 0
  %v138 = vsel %vm115, %v101, 0
  %vm140 = vcmask 1043456
  %v142 = vsel %vm140, %v114, 0
  %144 = vmatpush.msra.mxu0 0.0
  %145 = vmatpush.msra.mxu0 0.0
  %146 = vmatpush.msra.mxu0 0.0
  %147 = vmatpush.msra.mxu0 %v142
  %148 = vmatpush.msra.mxu0 %v113
  %149 = vmatpush.msra.mxu0 %v112
  %150 = vmatpush.msra.mxu0 %v111
  %151 = vmatpush.msra.mxu0 %v110
  %152 = vmatpush.msra.mxu0 %v109
  %153 = vmatpush.msra.mxu0 %v108
  %154 = vmatpush.msra.mxu0 %v107
  %155 = vmatpush.msra.mxu0 %v106
  %156 = vmatpush.msra.mxu0 %v105
  %157 = vmatpush.msra.mxu0 %v104
  %158 = vmatpush.msra.mxu0 %v103
  %159 = vmatpush.msra.mxu0 %v102
  %160 = vmatmul.f32.gmra.mxu0 %v117
  %v161 = vpop.f32.mrf.mxu0
  %v162 = vadd.f32 0.0, %v161
  %163 = vmatmul.f32.gmra.mxu0 %v120
  %v164 = vpop.f32.mrf.mxu0
  %v165 = vadd.f32 0.0, %v164
  %166 = vmatmul.f32.gmra.mxu0 %v123
  %v167 = vpop.f32.mrf.mxu0
  %v168 = vadd.f32 0.0, %v167
  %169 = vmatmul.f32.gmra.mxu0 %v126
  %v170 = vpop.f32.mrf.mxu0
  %v171 = vadd.f32 0.0, %v170
  %172 = vmatmul.f32.gmra.mxu0 %v129
  %v173 = vpop.f32.mrf.mxu0
  %v174 = vadd.f32 0.0, %v173
  %175 = vmatmul.f32.gmra.mxu0 %v132
  %v176 = vpop.f32.mrf.mxu0
  %v177 = vadd.f32 0.0, %v176
  %178 = vmatmul.f32.gmra.mxu0 %v135
  %v179 = vpop.f32.mrf.mxu0
  %v180 = vadd.f32 0.0, %v179
  %181 = vmatmul.f32.gmra.mxu0 %v138
  %v182 = vpop.f32.mrf.mxu0
  %v183 = vadd.f32 0.0, %v182
  %184 = vdwg.mxu0
  %v185 = vld [vmem:[%s2] sm:$0xff]
  %v186 = vld [vmem:[%s2 + $0x8] sm:$0xff]
  %v187 = vld [vmem:[%s2 + $0x10] sm:$0xff]
  %v188 = vld [vmem:[%s2 + $0x18] sm:$0xff]
  %v189 = vld [vmem:[%s4] sm:$0x1]
  %v191 = vperm.slane %v189, 0
  %vm193 = vcmask 261120
  %v195 = vsel %vm193, %v162, 0
  %v198 = vsel %vm193, %v165, 0
  %v201 = vsel %vm193, %v168, 0
  %v204 = vsel %vm193, %v171, 0
  %v207 = vsel %vm193, %v174, 0
  %v210 = vsel %vm193, %v177, 0
  %v213 = vsel %vm193, %v180, 0
  %v216 = vsel %vm193, %v183, 0
  %218 = vmatpush.msra.mxu0 0.0
  %219 = vmatpush.msra.mxu0 0.0
  %220 = vmatpush.msra.mxu0 0.0
  %221 = vmatpush.msra.mxu0 0.0
  %222 = vmatpush.msra.mxu0 0.0
  %223 = vmatpush.msra.mxu0 0.0
  %224 = vmatpush.msra.mxu0 0.0
  %225 = vmatpush.msra.mxu0 0.0
  %226 = vmatpush.msra.mxu0 0.0
  %227 = vmatpush.msra.mxu0 0.0
  %228 = vmatpush.msra.mxu0 0.0
  %229 = vmatpush.msra.mxu0 0.0
  %230 = vmatpush.msra.mxu0 %v188
  %231 = vmatpush.msra.mxu0 %v187
  %232 = vmatpush.msra.mxu0 %v186
  %233 = vmatpush.msra.mxu0 %v185
  %234 = vmatmul.f32.gmra.mxu0 %v195
  %v235 = vpop.f32.mrf.mxu0
  %v236 = vadd.f32 %v191, %v235
  %237 = vmatmul.f32.gmra.mxu0 %v198
  %v238 = vpop.f32.mrf.mxu0
  %v239 = vadd.f32 %v191, %v238
  %240 = vmatmul.f32.gmra.mxu0 %v201
  %v241 = vpop.f32.mrf.mxu0
  %v242 = vadd.f32 %v191, %v241
  %243 = vmatmul.f32.gmra.mxu0 %v204
  %v244 = vpop.f32.mrf.mxu0
  %v245 = vadd.f32 %v191, %v244
  %246 = vmatmul.f32.gmra.mxu0 %v207
  %v247 = vpop.f32.mrf.mxu0
  %v248 = vadd.f32 %v191, %v247
  %249 = vmatmul.f32.gmra.mxu0 %v210
  %v250 = vpop.f32.mrf.mxu0
  %v251 = vadd.f32 %v191, %v250
  %252 = vmatmul.f32.gmra.mxu0 %v213
  %v253 = vpop.f32.mrf.mxu0
  %v254 = vadd.f32 %v191, %v253
  %255 = vmatmul.f32.gmra.mxu0 %v216
  %v256 = vpop.f32.mrf.mxu0
  %v257 = vadd.f32 %v191, %v256
  %258 = vdwg.mxu0
  %259 = vst [vmem:[#allocation2] sm:$0xff] %v236
  %260 = vst [vmem:[#allocation2 + $0x8] sm:$0xff] %v239
  %261 = vst [vmem:[#allocation2 + $0x10] sm:$0xff] %v242
  %262 = vst [vmem:[#allocation2 + $0x18] sm:$0xff] %v245
  %263 = vst [vmem:[#allocation2 + $0x20] sm:$0xff] %v248
  %264 = vst [vmem:[#allocation2 + $0x28] sm:$0xff] %v251
  %265 = vst [vmem:[#allocation2 + $0x30] sm:$0xff] %v254
  %266 = vst [vmem:[#allocation2 + $0x38] sm:$0xff] %v257
  %vm267 = vcmp.ge.s32.totalorder %v53, 64
  %vm268 = vcmp.lt.s32.totalorder %v53, 96
  %vm269 = vmand %vm267, %vm268
  %v270 = vld [vmem:[%s3] sm:$0xff]
  %v271 = vld [vmem:[%s3 + $0x8] sm:$0xff]
  %v272 = vld [vmem:[%s3 + $0x10] sm:$0xff]
  %v273 = vld [vmem:[%s3 + $0x18] sm:$0xff]
  %v274 = vld [vmem:[#allocation2] sm:$0xff]
  %v276 = vsel %vm193, 0.0, 0
  %278 = vmatpush.msra.mxu0 0.0
  %279 = vmatpush.msra.mxu0 0.0
  %280 = vmatpush.msra.mxu0 0.0
  %281 = vmatpush.msra.mxu0 0.0
  %282 = vmatpush.msra.mxu0 0.0
  %283 = vmatpush.msra.mxu0 0.0
  %284 = vmatpush.msra.mxu0 0.0
  %285 = vmatpush.msra.mxu0 0.0
  %286 = vmatpush.msra.mxu0 0.0
  %287 = vmatpush.msra.mxu0 0.0
  %288 = vmatpush.msra.mxu0 0.0
  %289 = vmatpush.msra.mxu0 0.0
  %290 = vmatpush.msra.mxu0 %v273
  %291 = vmatpush.msra.mxu0 %v272
  %292 = vmatpush.msra.mxu0 %v271
  %293 = vmatpush.msra.mxu0 %v270
  %294 = vmatmul.f32.gmra.mxu0 %v276
  %v295 = vpop.f32.mrf.mxu0
  %v296 = vadd.f32 0.0, %v295
  %297 = vdwg.mxu0
  %v298 = vadd.f32 %v274, %v296
  %v299 = vmul.f32 %v298, 0.5
  %v300 = vsel %vm269, %v298, %v299
  %v301 = vtanh.pop %v300
  %v302 = vmul.f32 %v301, 0.5
  %v303 = vadd.f32 %v302, 0.5
  %v304 = vsel %vm269, %v301, %v303
  %v305 = vmul.f32 %v304, 0.0
  %307 = vrot.lane.b32.xlu0 %v304, 64
  %v308 = vpop.permute.xlu0 %307
  %v310 = vmul.f32 %v304, %v308
  %312 = vrot.lane.b32.xlu0 %v310, 32
  %v313 = vpop.permute.xlu0 %312
  %v315 = vadd.f32 %v305, %v313
  %v316 = vtanh.pop %v315
  %318 = vrot.lane.b32.xlu0 %v316, 64
  %v319 = vpop.permute.xlu0 %318
  %v321 = vmul.f32 %v304, %v319
  %s322 = scalar_lea.vmem [#allocation2], 8
  %v323 = vld [vmem:[%s322] sm:$0xff]
  %325 = vrot.lane.b32.xlu0 %v321, 32
  %v326 = vpop.permute.xlu0 %325
  %v327 = vsel %vm193, %v326, 0
  %329 = vmatpush.msra.mxu0 0.0
  %330 = vmatpush.msra.mxu0 0.0
  %331 = vmatpush.msra.mxu0 0.0
  %332 = vmatpush.msra.mxu0 0.0
  %333 = vmatpush.msra.mxu0 0.0
  %334 = vmatpush.msra.mxu0 0.0
  %335 = vmatpush.msra.mxu0 0.0
  %336 = vmatpush.msra.mxu0 0.0
  %337 = vmatpush.msra.mxu0 0.0
  %338 = vmatpush.msra.mxu0 0.0
  %339 = vmatpush.msra.mxu0 0.0
  %340 = vmatpush.msra.mxu0 0.0
  %341 = vmatpush.msra.mxu0 %v273
  %342 = vmatpush.msra.mxu0 %v272
  %343 = vmatpush.msra.mxu0 %v271
  %344 = vmatpush.msra.mxu0 %v270
  %345 = vmatmul.f32.gmra.mxu0 %v327
  %v346 = vpop.f32.mrf.mxu0
  %v347 = vadd.f32 0.0, %v346
  %348 = vdwg.mxu0
  %v349 = vadd.f32 %v323, %v347
  %v350 = vmul.f32 %v349, 0.5
  %v351 = vsel %vm269, %v349, %v350
  %v352 = vtanh.pop %v351
  %v353 = vmul.f32 %v352, 0.5
  %v354 = vadd.f32 %v353, 0.5
  %v355 = vsel %vm269, %v352, %v354
  %v356 = vmul.f32 %v355, %v315
  %358 = vrot.lane.b32.xlu0 %v355, 64
  %v359 = vpop.permute.xlu0 %358
  %v361 = vmul.f32 %v355, %v359
  %363 = vrot.lane.b32.xlu0 %v361, 32
  %v364 = vpop.permute.xlu0 %363
  %v366 = vadd.f32 %v356, %v364
  %v367 = vtanh.pop %v366
  %369 = vrot.lane.b32.xlu0 %v367, 64
  %v370 = vpop.permute.xlu0 %369
  %v372 = vmul.f32 %v355, %v370
  %s373 = scalar_lea.vmem [#allocation2], 16
  %v374 = vld [vmem:[%s373] sm:$0xff]
  %376 = vrot.lane.b32.xlu0 %v372, 32
  %v377 = vpop.permute.xlu0 %376
  %v378 = vsel %vm193, %v377, 0
  %380 = vmatpush.msra.mxu0 0.0
  %381 = vmatpush.msra.mxu0 0.0
  %382 = vmatpush.msra.mxu0 0.0
  %383 = vmatpush.msra.mxu0 0.0
  %384 = vmatpush.msra.mxu0 0.0
  %385 = vmatpush.msra.mxu0 0.0
  %386 = vmatpush.msra.mxu0 0.0
  %387 = vmatpush.msra.mxu0 0.0
  %388 = vmatpush.msra.mxu0 0.0
  %389 = vmatpush.msra.mxu0 0.0
  %390 = vmatpush.msra.mxu0 0.0
  %391 = vmatpush.msra.mxu0 0.0
  %392 = vmatpush.msra.mxu0 %v273
  %393 = vmatpush.msra.mxu0 %v272
  %394 = vmatpush.msra.mxu0 %v271
  %395 = vmatpush.msra.mxu0 %v270
  %396 = vmatmul.f32.gmra.mxu0 %v378
  %v397 = vpop.f32.mrf.mxu0
  %v398 = vadd.f32 0.0, %v397
  %399 = vdwg.mxu0
  %v400 = vadd.f32 %v374, %v398
  %v401 = vmul.f32 %v400, 0.5
  %v402 = vsel %vm269, %v400, %v401
  %v403 = vtanh.pop %v402
  %v404 = vmul.f32 %v403, 0.5
  %v405 = vadd.f32 %v404, 0.5
  %v406 = vsel %vm269, %v403, %v405
  %v407 = vmul.f32 %v406, %v366
  %409 = vrot.lane.b32.xlu0 %v406, 64
  %v410 = vpop.permute.xlu0 %409
  %v412 = vmul.f32 %v406, %v410
  %414 = vrot.lane.b32.xlu0 %v412, 32
  %v415 = vpop.permute.xlu0 %414
  %v417 = vadd.f32 %v407, %v415
  %v418 = vtanh.pop %v417
  %420 = vrot.lane.b32.xlu0 %v418, 64
  %v421 = vpop.permute.xlu0 %420
  %v423 = vmul.f32 %v406, %v421
  %s424 = scalar_lea.vmem [#allocation2], 24
  %v425 = vld [vmem:[%s424] sm:$0xff]
  %427 = vrot.lane.b32.xlu0 %v423, 32
  %v428 = vpop.permute.xlu0 %427
  %v429 = vsel %vm193, %v428, 0
  %431 = vmatpush.msra.mxu0 0.0
  %432 = vmatpush.msra.mxu0 0.0
  %433 = vmatpush.msra.mxu0 0.0
  %434 = vmatpush.msra.mxu0 0.0
  %435 = vmatpush.msra.mxu0 0.0
  %436 = vmatpush.msra.mxu0 0.0
  %437 = vmatpush.msra.mxu0 0.0
  %438 = vmatpush.msra.mxu0 0.0
  %439 = vmatpush.msra.mxu0 0.0
  %440 = vmatpush.msra.mxu0 0.0
  %441 = vmatpush.msra.mxu0 0.0
  %442 = vmatpush.msra.mxu0 0.0
  %443 = vmatpush.msra.mxu0 %v273
  %444 = vmatpush.msra.mxu0 %v272
  %445 = vmatpush.msra.mxu0 %v271
  %446 = vmatpush.msra.mxu0 %v270
  %447 = vmatmul.f32.gmra.mxu0 %v429
  %v448 = vpop.f32.mrf.mxu0
  %v449 = vadd.f32 0.0, %v448
  %450 = vdwg.mxu0
  %v451 = vadd.f32 %v425, %v449
  %v452 = vmul.f32 %v451, 0.5
  %v453 = vsel %vm269, %v451, %v452
  %v454 = vtanh.pop %v453
  %v455 = vmul.f32 %v454, 0.5
  %v456 = vadd.f32 %v455, 0.5
  %v457 = vsel %vm269, %v454, %v456
  %v458 = vmul.f32 %v457, %v417
  %460 = vrot.lane.b32.xlu0 %v457, 64
  %v461 = vpop.permute.xlu0 %460
  %v463 = vmul.f32 %v457, %v461
  %465 = vrot.lane.b32.xlu0 %v463, 32
  %v466 = vpop.permute.xlu0 %465
  %v468 = vadd.f32 %v458, %v466
  %v469 = vtanh.pop %v468
  %471 = vrot.lane.b32.xlu0 %v469, 64
  %v472 = vpop.permute.xlu0 %471
  %v474 = vmul.f32 %v457, %v472
  %s475 = scalar_lea.vmem [#allocation2], 32
  %v476 = vld [vmem:[%s475] sm:$0xff]
  %478 = vrot.lane.b32.xlu0 %v474, 32
  %v479 = vpop.permute.xlu0 %478
  %v480 = vsel %vm193, %v479, 0
  %482 = vmatpush.msra.mxu0 0.0
  %483 = vmatpush.msra.mxu0 0.0
  %484 = vmatpush.msra.mxu0 0.0
  %485 = vmatpush.msra.mxu0 0.0
  %486 = vmatpush.msra.mxu0 0.0
  %487 = vmatpush.msra.mxu0 0.0
  %488 = vmatpush.msra.mxu0 0.0
  %489 = vmatpush.msra.mxu0 0.0
  %490 = vmatpush.msra.mxu0 0.0
  %491 = vmatpush.msra.mxu0 0.0
  %492 = vmatpush.msra.mxu0 0.0
  %493 = vmatpush.msra.mxu0 0.0
  %494 = vmatpush.msra.mxu0 %v273
  %495 = vmatpush.msra.mxu0 %v272
  %496 = vmatpush.msra.mxu0 %v271
  %497 = vmatpush.msra.mxu0 %v270
  %498 = vmatmul.f32.gmra.mxu0 %v480
  %v499 = vpop.f32.mrf.mxu0
  %v500 = vadd.f32 0.0, %v499
  %501 = vdwg.mxu0
  %v502 = vadd.f32 %v476, %v500
  %v503 = vmul.f32 %v502, 0.5
  %v504 = vsel %vm269, %v502, %v503
  %v505 = vtanh.pop %v504
  %v506 = vmul.f32 %v505, 0.5
  %v507 = vadd.f32 %v506, 0.5
  %v508 = vsel %vm269, %v505, %v507
  %v509 = vmul.f32 %v508, %v468
  %511 = vrot.lane.b32.xlu0 %v508, 64
  %v512 = vpop.permute.xlu0 %511
  %v514 = vmul.f32 %v508, %v512
  %516 = vrot.lane.b32.xlu0 %v514, 32
  %v517 = vpop.permute.xlu0 %516
  %v519 = vadd.f32 %v509, %v517
  %v520 = vtanh.pop %v519
  %522 = vrot.lane.b32.xlu0 %v520, 64
  %v523 = vpop.permute.xlu0 %522
  %v525 = vmul.f32 %v508, %v523
  %s526 = scalar_lea.vmem [#allocation2], 40
  %v527 = vld [vmem:[%s526] sm:$0xff]
  %529 = vrot.lane.b32.xlu0 %v525, 32
  %v530 = vpop.permute.xlu0 %529
  %v531 = vsel %vm193, %v530, 0
  %533 = vmatpush.msra.mxu0 0.0
  %534 = vmatpush.msra.mxu0 0.0
  %535 = vmatpush.msra.mxu0 0.0
  %536 = vmatpush.msra.mxu0 0.0
  %537 = vmatpush.msra.mxu0 0.0
  %538 = vmatpush.msra.mxu0 0.0
  %539 = vmatpush.msra.mxu0 0.0
  %540 = vmatpush.msra.mxu0 0.0
  %541 = vmatpush.msra.mxu0 0.0
  %542 = vmatpush.msra.mxu0 0.0
  %543 = vmatpush.msra.mxu0 0.0
  %544 = vmatpush.msra.mxu0 0.0
  %545 = vmatpush.msra.mxu0 %v273
  %546 = vmatpush.msra.mxu0 %v272
  %547 = vmatpush.msra.mxu0 %v271
  %548 = vmatpush.msra.mxu0 %v270
  %549 = vmatmul.f32.gmra.mxu0 %v531
  %v550 = vpop.f32.mrf.mxu0
  %v551 = vadd.f32 0.0, %v550
  %552 = vdwg.mxu0
  %v553 = vadd.f32 %v527, %v551
  %v554 = vmul.f32 %v553, 0.5
  %v555 = vsel %vm269, %v553, %v554
  %v556 = vtanh.pop %v555
  %v557 = vmul.f32 %v556, 0.5
  %v558 = vadd.f32 %v557, 0.5
  %v559 = vsel %vm269, %v556, %v558
  %v560 = vmul.f32 %v559, %v519
  %562 = vrot.lane.b32.xlu0 %v559, 64
  %v563 = vpop.permute.xlu0 %562
  %v565 = vmul.f32 %v559, %v563
  %567 = vrot.lane.b32.xlu0 %v565, 32
  %v568 = vpop.permute.xlu0 %567
  %v570 = vadd.f32 %v560, %v568
  %v571 = vtanh.pop %v570
  %573 = vrot.lane.b32.xlu0 %v571, 64
  %v574 = vpop.permute.xlu0 %573
  %v576 = vmul.f32 %v559, %v574
  %s577 = scalar_lea.vmem [#allocation2], 48
  %v578 = vld [vmem:[%s577] sm:$0xff]
  %580 = vrot.lane.b32.xlu0 %v576, 32
  %v581 = vpop.permute.xlu0 %580
  %v582 = vsel %vm193, %v581, 0
  %584 = vmatpush.msra.mxu0 0.0
  %585 = vmatpush.msra.mxu0 0.0
  %586 = vmatpush.msra.mxu0 0.0
  %587 = vmatpush.msra.mxu0 0.0
  %588 = vmatpush.msra.mxu0 0.0
  %589 = vmatpush.msra.mxu0 0.0
  %590 = vmatpush.msra.mxu0 0.0
  %591 = vmatpush.msra.mxu0 0.0
  %592 = vmatpush.msra.mxu0 0.0
  %593 = vmatpush.msra.mxu0 0.0
  %594 = vmatpush.msra.mxu0 0.0
  %595 = vmatpush.msra.mxu0 0.0
  %596 = vmatpush.msra.mxu0 %v273
  %597 = vmatpush.msra.mxu0 %v272
  %598 = vmatpush.msra.mxu0 %v271
  %599 = vmatpush.msra.mxu0 %v270
  %600 = vmatmul.f32.gmra.mxu0 %v582
  %v601 = vpop.f32.mrf.mxu0
  %v602 = vadd.f32 0.0, %v601
  %603 = vdwg.mxu0
  %v604 = vadd.f32 %v578, %v602
  %v605 = vmul.f32 %v604, 0.5
  %v606 = vsel %vm269, %v604, %v605
  %v607 = vtanh.pop %v606
  %v608 = vmul.f32 %v607, 0.5
  %v609 = vadd.f32 %v608, 0.5
  %v610 = vsel %vm269, %v607, %v609
  %v611 = vmul.f32 %v610, %v570
  %613 = vrot.lane.b32.xlu0 %v610, 64
  %v614 = vpop.permute.xlu0 %613
  %v616 = vmul.f32 %v610, %v614
  %618 = vrot.lane.b32.xlu0 %v616, 32
  %v619 = vpop.permute.xlu0 %618
  %v621 = vadd.f32 %v611, %v619
  %v622 = vtanh.pop %v621
  %624 = vrot.lane.b32.xlu0 %v622, 64
  %v625 = vpop.permute.xlu0 %624
  %v627 = vmul.f32 %v610, %v625
  %s628 = scalar_lea.vmem [#allocation2], 56
  %v629 = vld [vmem:[%s628] sm:$0xff]
  %631 = vrot.lane.b32.xlu0 %v627, 32
  %v632 = vpop.permute.xlu0 %631
  %v633 = vsel %vm193, %v632, 0
  %635 = vmatpush.msra.mxu0 0.0
  %636 = vmatpush.msra.mxu0 0.0
  %637 = vmatpush.msra.mxu0 0.0
  %638 = vmatpush.msra.mxu0 0.0
  %639 = vmatpush.msra.mxu0 0.0
  %640 = vmatpush.msra.mxu0 0.0
  %641 = vmatpush.msra.mxu0 0.0
  %642 = vmatpush.msra.mxu0 0.0
  %643 = vmatpush.msra.mxu0 0.0
  %644 = vmatpush.msra.mxu0 0.0
  %645 = vmatpush.msra.mxu0 0.0
  %646 = vmatpush.msra.mxu0 0.0
  %647 = vmatpush.msra.mxu0 %v273
  %648 = vmatpush.msra.mxu0 %v272
  %649 = vmatpush.msra.mxu0 %v271
  %650 = vmatpush.msra.mxu0 %v270
  %651 = vmatmul.f32.gmra.mxu0 %v633
  %v652 = vpop.f32.mrf.mxu0
  %v653 = vadd.f32 0.0, %v652
  %654 = vdwg.mxu0
  %v655 = vadd.f32 %v629, %v653
  %v656 = vmul.f32 %v655, 0.5
  %v657 = vsel %vm269, %v655, %v656
  %v658 = vtanh.pop %v657
  %v659 = vmul.f32 %v658, 0.5
  %v660 = vadd.f32 %v659, 0.5
  %v661 = vsel %vm269, %v658, %v660
  %v662 = vmul.f32 %v661, %v621
  %664 = vrot.lane.b32.xlu0 %v661, 64
  %v665 = vpop.permute.xlu0 %664
  %v667 = vmul.f32 %v661, %v665
  %669 = vrot.lane.b32.xlu0 %v667, 32
  %v670 = vpop.permute.xlu0 %669
  %v672 = vadd.f32 %v662, %v670
  %v673 = vtanh.pop %v672
  %675 = vrot.lane.b32.xlu0 %v673, 64
  %v676 = vpop.permute.xlu0 %675
  %v678 = vmul.f32 %v661, %v676
  %v679 = vld [vmem:[%s5] sm:$0xff]
  %v680 = vld [vmem:[%s6] sm:$0xff]
  %v681 = vld [vmem:[%s6 + $0x8] sm:$0xff]
  %v682 = vld [vmem:[%s7] sm:$0x1]
  %v684 = vperm.slane %v682, 0
  %vm686 = vcmask 130048
  %v688 = vsel %vm686, %v679, 0
  %690 = vmatpush.msra.mxu0 0.0
  %691 = vmatpush.msra.mxu0 0.0
  %692 = vmatpush.msra.mxu0 0.0
  %693 = vmatpush.msra.mxu0 0.0
  %694 = vmatpush.msra.mxu0 0.0
  %695 = vmatpush.msra.mxu0 0.0
  %696 = vmatpush.msra.mxu0 0.0
  %697 = vmatpush.msra.mxu0 0.0
  %698 = vmatpush.msra.mxu0 0.0
  %699 = vmatpush.msra.mxu0 0.0
  %700 = vmatpush.msra.mxu0 0.0
  %701 = vmatpush.msra.mxu0 0.0
  %702 = vmatpush.msra.mxu0 0.0
  %703 = vmatpush.msra.mxu0 0.0
  %704 = vmatpush.msra.mxu0 %v681
  %705 = vmatpush.msra.mxu0 %v680
  %706 = vmatmul.f32.gmra.mxu0 %v688
  %v707 = vpop.f32.mrf.mxu0
  %v708 = vadd.f32 %v684, %v707
  %709 = vdwg.mxu0
  %v710 = vld [vmem:[%s8] sm:$0xff]
  %v711 = vld [vmem:[%s8 + $0x8] sm:$0xff]
  %v712 = vld [vmem:[%s8 + $0x10] sm:$0xff]
  %v713 = vld [vmem:[%s8 + $0x18] sm:$0xff]
  %v714 = vld [vmem:[%s9] sm:$0xff]
  %v715 = vld [vmem:[%s9 + $0x8] sm:$0xff]
  %v716 = vld [vmem:[%s9 + $0x10] sm:$0xff]
  %v717 = vld [vmem:[%s9 + $0x18] sm:$0xff]
  %v719 = vsel %vm193, %v708, 0
  %721 = vmatpush.msra.mxu0 0.0
  %722 = vmatpush.msra.mxu0 0.0
  %723 = vmatpush.msra.mxu0 0.0
  %724 = vmatpush.msra.mxu0 0.0
  %725 = vmatpush.msra.mxu0 0.0
  %726 = vmatpush.msra.mxu0 0.0
  %727 = vmatpush.msra.mxu0 0.0
  %728 = vmatpush.msra.mxu0 0.0
  %729 = vmatpush.msra.mxu0 0.0
  %730 = vmatpush.msra.mxu0 0.0
  %731 = vmatpush.msra.mxu0 0.0
  %732 = vmatpush.msra.mxu0 0.0
  %733 = vmatpush.msra.mxu0 %v717
  %734 = vmatpush.msra.mxu0 %v716
  %735 = vmatpush.msra.mxu0 %v715
  %736 = vmatpush.msra.mxu0 %v714
  %737 = vmatmul.f32.gmra.mxu0 %v719
  %v738 = vpop.f32.mrf.mxu0
  %v739 = vadd.f32 0.0, %v738
  %740 = vdwg.mxu0
  %742 = vrot.lane.b32.xlu0 %v678, 32
  %v743 = vpop.permute.xlu0 %742
  %v744 = vsel %vm193, %v743, 0
  %746 = vmatpush.msra.mxu0 0.0
  %747 = vmatpush.msra.mxu0 0.0
  %748 = vmatpush.msra.mxu0 0.0
  %749 = vmatpush.msra.mxu0 0.0
  %750 = vmatpush.msra.mxu0 0.0
  %751 = vmatpush.msra.mxu0 0.0
  %752 = vmatpush.msra.mxu0 0.0
  %753 = vmatpush.msra.mxu0 0.0
  %754 = vmatpush.msra.mxu0 0.0
  %755 = vmatpush.msra.mxu0 0.0
  %756 = vmatpush.msra.mxu0 0.0
  %757 = vmatpush.msra.mxu0 0.0
  %758 = vmatpush.msra.mxu0 %v713
  %759 = vmatpush.msra.mxu0 %v712
  %760 = vmatpush.msra.mxu0 %v711
  %761 = vmatpush.msra.mxu0 %v710
  %762 = vmatmul.f32.gmra.mxu0 %v744
  %v763 = vpop.f32.mrf.mxu0
  %v764 = vadd.f32 %v739, %v763
  %765 = vdwg.mxu0
  %v766 = vld [vmem:[%s10] sm:$0x1]
  %v768 = vperm.slane %v766, 0
  %v770 = vadd.f32 %v764, %v768
  %v771 = vmax.f32 %v770, 0.0
  %v772 = vld [vmem:[%s11] sm:$0xff]
  %v773 = vld [vmem:[%s11 + $0x8] sm:$0xff]
  %v774 = vld [vmem:[%s11 + $0x10] sm:$0xff]
  %v775 = vld [vmem:[%s11 + $0x18] sm:$0xff]
  %v776 = vld [vmem:[%s12] sm:$0x1]
  %v778 = vperm.slane %v776, 0
  %v781 = vsel %vm193, %v771, 0
  %783 = vmatpush.msra.mxu0 0.0
  %784 = vmatpush.msra.mxu0 0.0
  %785 = vmatpush.msra.mxu0 0.0
  %786 = vmatpush.msra.mxu0 0.0
  %787 = vmatpush.msra.mxu0 0.0
  %788 = vmatpush.msra.mxu0 0.0
  %789 = vmatpush.msra.mxu0 0.0
  %790 = vmatpush.msra.mxu0 0.0
  %791 = vmatpush.msra.mxu0 0.0
  %792 = vmatpush.msra.mxu0 0.0
  %793 = vmatpush.msra.mxu0 0.0
  %794 = vmatpush.msra.mxu0 0.0
  %795 = vmatpush.msra.mxu0 %v775
  %796 = vmatpush.msra.mxu0 %v774
  %797 = vmatpush.msra.mxu0 %v773
  %798 = vmatpush.msra.mxu0 %v772
  %799 = vmatmul.f32.gmra.mxu0 %v781
  %v800 = vpop.f32.mrf.mxu0
  %v801 = vadd.f32 %v778, %v800
  %802 = vdwg.mxu0
  %vm803 = vcmask 64512
  %804 = vst.msk [vmem:[%s13] sm:$0xff] %vm803, %v801
  // Predicated region
  $region54: #{hybrid_forward.1} parent=0 // pred_check
    _
  $region55: #{hybrid_forward.1} parent=0 // pred_check_branch
    %806 = sbr.rel (0) target = $region57
  $region56: #{hybrid_forward.1} parent=0 // pred_region
    _
  $region57: #{hybrid_forward.1} parent=0 // pred_fallthru
    _
  // Predicated region
  $region58: #{hybrid_forward.1} parent=0 // pred_check
    _
  $region59: #{hybrid_forward.1} parent=0 // pred_check_branch
    %808 = sbr.rel (0) target = $region61
  $region60: #{hybrid_forward.1} parent=0 // pred_region
    _
  $region61: #{hybrid_forward.1} parent=0 // pred_fallthru
    _

</llo_original>
